<compile_context>
chip_gen: v5e
topology: v5e:2x2
jax: 0.10.0
libtpu: 0.0.40
codegen_flags: <defaults>
</compile_context>

<pallas_src>
import functools

import jax
import jax.numpy as jnp
from jax.experimental import pallas as pl
from jax.experimental.pallas import tpu as pltpu

LANE = 128
NUM_CORE_SPLITS = 2  # leading "parallel" grid axis; exploits both TCs on v7x.


def _cdiv(a, b):
    return -(-a // b)


def _round_up(a, b):
    return _cdiv(a, b) * b


def _sublane_multiple(dtype):
    # Minimum second-minor tile multiple for packed dtypes: f32 -> 8,
    # bf16/f16 -> 16, int8/bool -> 32.
    bits = jnp.dtype(dtype).itemsize * 8
    return max(8, 256 // bits)


def _iou_kernel(pr_ref, gt_ref, out_ref, acc_ref, *, threshold):
    k = pl.program_id(1)

    @pl.when(k == 0)
    def _():
        acc_ref[...] = jnp.zeros_like(acc_ref)

    pr = pr_ref[...].astype(jnp.float32)
    gt = gt_ref[...].astype(jnp.float32)

    if threshold is not None and threshold > 0:
        # weight in {0,1} and threshold > 0 => thresholded pr is just a mask.
        mask = jnp.logical_and(gt > 0.0, pr > threshold)
        pr_t = mask.astype(jnp.float32)
        inter = jnp.where(mask, gt, 0.0)          # == gt * pr_t
    else:
        # General fallback (threshold None or <= 0): original two-step form.
        weight = jnp.where(gt > 0.0, 1.0, 0.0)
        pr_w = pr * weight
        if threshold is not None:
            pr_t = jnp.where(pr_w > threshold, 1.0, 0.0)
        else:
            pr_t = pr_w
        inter = gt * pr_t

    def tile_sum(x):
        # (row_tile, 128) -> (8, 128) via layout-preserving reshape + VPU adds
        # (no cross-lane XLU reduction inside the hot loop).
        return jnp.sum(x.reshape(-1, 8, LANE), axis=0)

    acc_ref[0] += tile_sum(inter)
    acc_ref[1] += tile_sum(gt)
    acc_ref[2] += tile_sum(pr_t)

    @pl.when(k == pl.num_programs(1) - 1)
    def _():
        out_ref[0] = acc_ref[...]


def iou_pallas(y_pr, y_gt, eps=1e-7, threshold=0.5, row_tile=1024):
    """y_pr, y_gt: NCHW arrays of identical shape (any float/integer dtype)."""
    assert y_pr.shape == y_gt.shape
    total = int(y_pr.size)
    p_splits = NUM_CORE_SPLITS

    # Sublane-tiling requirement for the (possibly narrow) native dtypes.
    sub = max(_sublane_multiple(y_pr.dtype), _sublane_multiple(y_gt.dtype))

    rows = _cdiv(total, LANE)
    rows_per_split = _cdiv(rows, p_splits)
    row_tile_eff = min(int(row_tile), _round_up(rows_per_split, sub))
    row_tile_eff = _round_up(row_tile_eff, sub)

    n_tiles = _cdiv(rows, p_splits * row_tile_eff)
    rows_padded = p_splits * n_tiles * row_tile_eff
    padded_total = rows_padded * LANE

    # Zero padding is neutral for all three sums (gt=0 contributes nothing,
    # pr=0 fails the >threshold test for threshold >= 0, and for the fallback
    # path pr*weight = 0 as well).
    pr_flat = jnp.ravel(y_pr)
    gt_flat = jnp.ravel(y_gt)
    if padded_total > total:
        pad = padded_total - total
        pr_flat = jnp.pad(pr_flat, (0, pad))
        gt_flat = jnp.pad(gt_flat, (0, pad))
    pr2 = pr_flat.reshape(rows_padded, LANE)
    gt2 = gt_flat.reshape(rows_padded, LANE)

    kernel = functools.partial(
        _iou_kernel,
        threshold=None if threshold is None else float(threshold),
    )

    out_bytes = p_splits * 3 * 8 * LANE * 4
    cost = pl.CostEstimate(
        flops=8 * padded_total,
        transcendentals=0,
        bytes_accessed=int(pr2.nbytes) + int(gt2.nbytes) + out_bytes,
    )

    partials = pl.pallas_call(
        kernel,
        out_shape=jax.ShapeDtypeStruct((p_splits, 3, 8, LANE), jnp.float32),
        grid_spec=pltpu.PrefetchScalarGridSpec(
            num_scalar_prefetch=0,
            grid=(p_splits, n_tiles),
            in_specs=[
                pl.BlockSpec((row_tile_eff, LANE),
                             lambda p, k: (p * n_tiles + k, 0)),
                pl.BlockSpec((row_tile_eff, LANE),
                             lambda p, k: (p * n_tiles + k, 0)),
            ],
            out_specs=pl.BlockSpec((1, 3, 8, LANE),
                                   lambda p, k: (p, 0, 0, 0)),
            scratch_shapes=[pltpu.VMEM((3, 8, LANE), jnp.float32)],
        ),
        compiler_params=pltpu.CompilerParams(
            dimension_semantics=("parallel", "arbitrary")),
        cost_estimate=cost,
    )(pr2, gt2)

    # Single tiny cross-lane/sublane reduction + final IoU formula in JAX.
    sums = jnp.sum(partials, axis=(0, 2, 3))            # (3,)
    inter, sum_gt, sum_pr = sums[0], sums[1], sums[2]
    union = sum_gt + sum_pr - inter + eps
    return (inter + eps) / union


def iou_ref(y_pr, y_gt, eps=1e-7, threshold=0.5):
    """Pure-JAX reference matching the PyTorch module."""
    y_pr = y_pr.astype(jnp.float32)
    y_gt = y_gt.astype(jnp.float32)
    weight = jnp.where(y_gt > 0, 1.0, 0.0)
    y_pr = y_pr * weight
    if threshold is not None:
        y_pr = (y_pr > threshold).astype(jnp.float32)
    inter = jnp.sum(y_gt * y_pr)
    union = jnp.sum(y_gt) + jnp.sum(y_pr) - inter + eps
    return (inter + eps) / union


if __name__ == "__main__":
    key = jax.random.PRNGKey(0)
    k1, k2 = jax.random.split(key)
    # NCHW: batch=2, channels=4, spatial=16x16
    y_pr = jax.random.uniform(k1, (2, 4, 16, 16), dtype=jnp.float32)
    y_gt = (jax.random.uniform(k2, (2, 4, 16, 16), dtype=jnp.float32) > 0.5
            ).astype(jnp.float32)

    out = iou_pallas(y_pr, y_gt)
    out = jax.block_until_ready(out)

    ref = iou_ref(y_pr, y_gt)
    assert jnp.allclose(out, ref, rtol=1e-5, atol=1e-6), (out, ref)
    print("KERNEL_OK")
</pallas_src>

<mosaic_0001>
module attributes {stable_mosaic.version = 11 : i64} {
  func.func @_iou_kernel(%arg0: i32, %arg1: i32, %arg2: memref<8x128xf32, #tpu.memory_space<vmem>>, %arg3: memref<8x128xf32, #tpu.memory_space<vmem>>, %arg4: memref<1x3x8x128xf32, #tpu.memory_space<vmem>>, %arg5: memref<3x8x128xf32, #tpu.memory_space<vmem>>) attributes {dimension_semantics = [#tpu.dimension_semantics<parallel>, #tpu.dimension_semantics<arbitrary>], iteration_bounds = array<i64: 2, 1>, scalar_prefetch = 0 : i64, scratch_operands = 1 : i64, tpu.core_type = #tpu.core_type<tc>, window_params = [{transform_indices = @transform_0, window_bounds = array<i64: 8, 128>}, {transform_indices = @transform_1, window_bounds = array<i64: 8, 128>}, {transform_indices = @transform_2, window_bounds = array<i64: 1, 3, 8, 128>}]} {
    %c0_i32 = arith.constant 0 : i32
    %0 = arith.cmpi eq, %arg1, %c0_i32 : i32
    %1 = arith.extui %0 : i1 to i32
    %c0_i32_0 = arith.constant 0 : i32
    %2 = arith.cmpi ne, %1, %c0_i32_0 : i32
    scf.if %2 {
      %cst_27 = arith.constant 0.000000e+00 : f32
      %41 = vector.broadcast %cst_27 : f32 to vector<3x8x128xf32>
      %c0_28 = arith.constant 0 : index
      %c0_29 = arith.constant 0 : index
      %c0_30 = arith.constant 0 : index
      %42 = vector.load %arg5[%c0_28, %c0_29, %c0_30] : memref<3x8x128xf32, #tpu.memory_space<vmem>>, vector<3x8x128xf32>
      tpu.vector_store %arg5[%c0_28, %c0_29, %c0_30], %41 {strides = array<i32>} : memref<3x8x128xf32, #tpu.memory_space<vmem>>, vector<3x8x128xf32>,
    } else {
    }
    %c0 = arith.constant 0 : index
    %c0_1 = arith.constant 0 : index
    %3 = vector.load %arg2[%c0, %c0_1] : memref<8x128xf32, #tpu.memory_space<vmem>>, vector<8x128xf32>
    %c0_2 = arith.constant 0 : index
    %c0_3 = arith.constant 0 : index
    %4 = vector.load %arg3[%c0_2, %c0_3] : memref<8x128xf32, #tpu.memory_space<vmem>>, vector<8x128xf32>
    %cst = arith.constant 0.000000e+00 : f32
    %5 = vector.broadcast %cst : f32 to vector<8x128xf32>
    %6 = arith.cmpf ogt, %4, %5 : vector<8x128xf32>
    %cst_4 = arith.constant 5.000000e-01 : f32
    %7 = vector.broadcast %cst_4 : f32 to vector<8x128xf32>
    %8 = arith.cmpf ogt, %3, %7 : vector<8x128xf32>
    %9 = arith.andi %6, %8 : vector<8x128xi1>
    %10 = arith.extui %9 : vector<8x128xi1> to vector<8x128xi32>
    %11 = arith.sitofp %10 : vector<8x128xi32> to vector<8x128xf32>
    %cst_5 = arith.constant 0.000000e+00 : f32
    %12 = vector.broadcast %cst_5 : f32 to vector<8x128xf32>
    %13 = arith.select %9, %4, %12 : vector<8x128xi1>, vector<8x128xf32>
    %c0_6 = arith.constant 0 : index
    %c0_7 = arith.constant 0 : index
    %c0_8 = arith.constant 0 : index
    %14 = vector.load %arg5[%c0_6, %c0_7, %c0_8] : memref<3x8x128xf32, #tpu.memory_space<vmem>>, vector<1x8x128xf32>
    %15 = vector.shape_cast %14 : vector<1x8x128xf32> to vector<8x128xf32>
    %16 = vector.shape_cast %13 : vector<8x128xf32> to vector<1x8x128xf32>
    %cst_9 = arith.constant dense<0.000000e+00> : vector<8x128xf32>
    %17 = vector.multi_reduction <add>, %16, %cst_9 [0] : vector<1x8x128xf32> to vector<8x128xf32>
    %18 = arith.addf %15, %17 : vector<8x128xf32>
    %c0_10 = arith.constant 0 : index
    %c0_11 = arith.constant 0 : index
    %c0_12 = arith.constant 0 : index
    %19 = vector.load %arg5[%c0_10, %c0_11, %c0_12] : memref<3x8x128xf32, #tpu.memory_space<vmem>>, vector<1x8x128xf32>
    %20 = vector.shape_cast %19 : vector<1x8x128xf32> to vector<8x128xf32>
    %21 = vector.shape_cast %18 : vector<8x128xf32> to vector<1x8x128xf32>
    tpu.vector_store %arg5[%c0_10, %c0_11, %c0_12], %21 {strides = array<i32>} : memref<3x8x128xf32, #tpu.memory_space<vmem>>, vector<1x8x128xf32>,
    %c1 = arith.constant 1 : index
    %c0_13 = arith.constant 0 : index
    %c0_14 = arith.constant 0 : index
    %22 = vector.load %arg5[%c1, %c0_13, %c0_14] : memref<3x8x128xf32, #tpu.memory_space<vmem>>, vector<1x8x128xf32>
    %23 = vector.shape_cast %22 : vector<1x8x128xf32> to vector<8x128xf32>
    %24 = vector.shape_cast %4 : vector<8x128xf32> to vector<1x8x128xf32>
    %cst_15 = arith.constant dense<0.000000e+00> : vector<8x128xf32>
    %25 = vector.multi_reduction <add>, %24, %cst_15 [0] : vector<1x8x128xf32> to vector<8x128xf32>
    %26 = arith.addf %23, %25 : vector<8x128xf32>
    %c1_16 = arith.constant 1 : index
    %c0_17 = arith.constant 0 : index
    %c0_18 = arith.constant 0 : index
    %27 = vector.load %arg5[%c1_16, %c0_17, %c0_18] : memref<3x8x128xf32, #tpu.memory_space<vmem>>, vector<1x8x128xf32>
    %28 = vector.shape_cast %27 : vector<1x8x128xf32> to vector<8x128xf32>
    %29 = vector.shape_cast %26 : vector<8x128xf32> to vector<1x8x128xf32>
    tpu.vector_store %arg5[%c1_16, %c0_17, %c0_18], %29 {strides = array<i32>} : memref<3x8x128xf32, #tpu.memory_space<vmem>>, vector<1x8x128xf32>,
    %c2 = arith.constant 2 : index
    %c0_19 = arith.constant 0 : index
    %c0_20 = arith.constant 0 : index
    %30 = vector.load %arg5[%c2, %c0_19, %c0_20] : memref<3x8x128xf32, #tpu.memory_space<vmem>>, vector<1x8x128xf32>
    %31 = vector.shape_cast %30 : vector<1x8x128xf32> to vector<8x128xf32>
    %32 = vector.shape_cast %11 : vector<8x128xf32> to vector<1x8x128xf32>
    %cst_21 = arith.constant dense<0.000000e+00> : vector<8x128xf32>
    %33 = vector.multi_reduction <add>, %32, %cst_21 [0] : vector<1x8x128xf32> to vector<8x128xf32>
    %34 = arith.addf %31, %33 : vector<8x128xf32>
    %c2_22 = arith.constant 2 : index
    %c0_23 = arith.constant 0 : index
    %c0_24 = arith.constant 0 : index
    %35 = vector.load %arg5[%c2_22, %c0_23, %c0_24] : memref<3x8x128xf32, #tpu.memory_space<vmem>>, vector<1x8x128xf32>
    %36 = vector.shape_cast %35 : vector<1x8x128xf32> to vector<8x128xf32>
    %37 = vector.shape_cast %34 : vector<8x128xf32> to vector<1x8x128xf32>
    tpu.vector_store %arg5[%c2_22, %c0_23, %c0_24], %37 {strides = array<i32>} : memref<3x8x128xf32, #tpu.memory_space<vmem>>, vector<1x8x128xf32>,
    %c0_i32_25 = arith.constant 0 : i32
    %38 = arith.cmpi eq, %arg1, %c0_i32_25 : i32
    %39 = arith.extui %38 : i1 to i32
    %c0_i32_26 = arith.constant 0 : i32
    %40 = arith.cmpi ne, %39, %c0_i32_26 : i32
    scf.if %40 {
      %c0_27 = arith.constant 0 : index
      %c0_28 = arith.constant 0 : index
      %c0_29 = arith.constant 0 : index
      %41 = vector.load %arg5[%c0_27, %c0_28, %c0_29] : memref<3x8x128xf32, #tpu.memory_space<vmem>>, vector<3x8x128xf32>
      %c0_30 = arith.constant 0 : index
      %c0_31 = arith.constant 0 : index
      %c0_32 = arith.constant 0 : index
      %c0_33 = arith.constant 0 : index
      %42 = vector.load %arg4[%c0_30, %c0_31, %c0_32, %c0_33] : memref<1x3x8x128xf32, #tpu.memory_space<vmem>>, vector<1x3x8x128xf32>
      %43 = vector.shape_cast %42 : vector<1x3x8x128xf32> to vector<3x8x128xf32>
      %44 = vector.shape_cast %41 : vector<3x8x128xf32> to vector<1x3x8x128xf32>
      tpu.vector_store %arg4[%c0_30, %c0_31, %c0_32, %c0_33], %44 {strides = array<i32>} : memref<1x3x8x128xf32, #tpu.memory_space<vmem>>, vector<1x3x8x128xf32>,
    } else {
    }
    return
  }
  func.func @transform_0(%arg0: i32, %arg1: i32) -> (i32, i32) {
    %c1_i32 = arith.constant 1 : i32
    %0 = arith.muli %arg0, %c1_i32 : i32
    %1 = arith.addi %0, %arg1 : i32
    %c0_i32 = arith.constant 0 : i32
    %c0_i32_0 = arith.constant 0 : i32
    return %1, %c0_i32 : i32, i32
  }
  func.func @transform_1(%arg0: i32, %arg1: i32) -> (i32, i32) {
    %c1_i32 = arith.constant 1 : i32
    %0 = arith.muli %arg0, %c1_i32 : i32
    %1 = arith.addi %0, %arg1 : i32
    %c0_i32 = arith.constant 0 : i32
    %c0_i32_0 = arith.constant 0 : i32
    return %1, %c0_i32 : i32, i32
  }
  func.func @transform_2(%arg0: i32, %arg1: i32) -> (i32, i32, i32, i32) {
    %c0_i32 = arith.constant 0 : i32
    %c0_i32_0 = arith.constant 0 : i32
    %c0_i32_1 = arith.constant 0 : i32
    %c0_i32_2 = arith.constant 0 : i32
    return %arg0, %c0_i32, %c0_i32_0, %c0_i32_1 : i32, i32, i32, i32
  }
}

</mosaic_0001>

<llo_original>
// kernel: tpu_custom_call.1
$region0: #{tpu_custom_call.1}
  #allocation0 [shape = 'u32[]', space=smem, size = 0x4, offset = 0x4, fixed_abs, tag = 'smem constant byte address 0x4 - core index']
  #allocation1 [shape = 'u32[72,128]{1,0:T(1,128)}', space=vmem, size = 0x9000, scoped, tag = 'internal scratch']
  #allocation2 [shape = 'f32[3,8,128]{2,1,0:T(8,128)}', space=vmem, size = 0x3000, scoped, tag = 'scratch operand']
  %s0 = inlined_call_operand.hbm [shape: f32[16,128], index: 0, kind: input, shape index: {}]
  %s1 = inlined_call_operand.hbm [shape: f32[16,128], index: 1, kind: input, shape index: {}]
  %s2 = inlined_call_operand.hbm [shape: f32[2,3,8,128], index: 2, kind: output, shape index: {}]
  %s3 = sld [smem:[#allocation0]]
  $region57: #{tpu_custom_call.1} parent=0
    _
  %s5 = ssub.s32 1, %s3
  %s6 = scalar_select 0, %s5, %s3
  $region1: #{tpu_custom_call.1} parent=0
    #allocation3 [shape = 'u8[8192]{0}', space=vmem, size = 0x2000, scoped, tag = 'input window, operand 0']
    #allocation4 [shape = 's32[2]{0}', space=sflag, size = 0x8, scoped, tag = 'scoped memory for tpu_custom_call.1']
    #allocation5 [shape = 's32[2]{0}', space=sflag, size = 0x8, scoped, tag = 'scoped memory for tpu_custom_call.1']
    #allocation6 [shape = 'u8[8192]{0}', space=vmem, size = 0x2000, scoped, tag = 'input window, operand 1']
    #allocation7 [shape = 's32[2]{0}', space=sflag, size = 0x8, scoped, tag = 'scoped memory for tpu_custom_call.1']
    #allocation8 [shape = 'u8[24576]{0}', space=vmem, size = 0x6000, scoped, tag = 'output window, operand 0']
    %7 = vsyncpa [#allocation4], 0
    %s8 = scalar_lea.sflag [#allocation4], 1
    %9 = vsyncpa %s8, 0
    %10 = vsyncpa [#allocation7], 0
    %s11 = scalar_lea.sflag [#allocation7], 1
    %12 = vsyncpa %s11, 0
    %13 = vsyncpa [#allocation5], 0
    %s14 = scalar_lea.sflag [#allocation5], 1
    %15 = vsyncpa %s14, 0
    loop: start=0, step=1, limit=4
    $region2: #{tpu_custom_call.1} parent=1 // loop_pre_header
      _
    $region3: #{tpu_custom_call.1} parent=1 // loop_header
      %s17 = sphi 0, %s21
      %p18 = scmp.ge.s32.totalorder %s17, 4
      %s24 = sphi 0, %s36
      %s25 = sphi 0, %s32
      %s26 = sphi 0, %s24
      %s27 = sphi 0, %s25
      %s28 = sphi 0, %s26
      %s29 = sphi 0, %s27
      %s41 = sphi 0, %s43
      %s44 = sphi 0, %s41
      %s45 = sphi 0, %s44
      %s61 = sphi 0, %s45
      %s69 = sphi 0, %s71
      %s72 = sphi 0, %s69
      %s73 = sphi 0, %s72
      %s89 = sphi 0, %s73
      %s95 = sphi 0, %s97
      %s98 = sphi 0, %s95
      %s99 = sphi 0, %s98
      %s115 = sphi 0, %s99
    $region4: #{tpu_custom_call.1} parent=1 // loop_header_branch
      %20 = sbr.rel (%p18) target = $region8
    $region5: #{tpu_custom_call.1} parent=1 // loop_body
      %s22 = ssub.s32 %s17, 1
      %s23 = ssub.s32 %s17, 2
      %s30 = sadd.s32 1, %s25
      %p31 = scmp.ge.s32.totalorder %s30, 1
      %s32 = scalar_select %p31, 0, %s30
      %s33 = sadd.s32 1, %s24
      %s34 = scalar_select %p31, %s33, %s24
      %p35 = scmp.ge.s32.totalorder %s34, 2
      %s36 = scalar_select %p35, 0, %s34
      %s37 = sadd.s32 %s24, %s25
      %s38 = sadd.s32 %s36, %s32
      %s39 = ssub.s32 %s37, %s38
      %p40 = scmp.eq.s32.totalorder %s39, 0
      %s42 = sadd.s32 %s41, 1
      %s43 = scalar_select %p40, %s41, %s42
      %p46 = pneg %p40
      %p47 = scmp.eq.s32.totalorder %s17, 1
      %p48 = por %p46, %p47
      %p49 = scmp.ne.s32.totalorder %s41, %s44
      %p50 = scmp.eq.s32.totalorder %s17, 0
      %p51 = por %p49, %p50
      %p52 = scmp.ne.s32.totalorder %s41, %s44
      %p53 = scmp.eq.s32.totalorder %s22, 1
      %p54 = por %p52, %p53
      %p55 = scmp.ne.s32.totalorder %s44, %s45
      %p56 = scmp.eq.s32.totalorder %s22, 0
      %p57 = por %p55, %p56
      %p58 = scmp.ne.s32.totalorder %s44, %s45
      %p59 = scmp.eq.s32.totalorder %s23, 1
      %p60 = por %p58, %p59
      %p62 = scmp.ne.s32.totalorder %s45, %s61
      %p63 = scmp.eq.s32.totalorder %s23, 0
      %p64 = por %p62, %p63
      %s65 = sadd.s32 %s24, %s25
      %s66 = sadd.s32 %s36, %s32
      %s67 = ssub.s32 %s65, %s66
      %p68 = scmp.eq.s32.totalorder %s67, 0
      %s70 = sadd.s32 %s69, 1
      %s71 = scalar_select %p68, %s69, %s70
      %p74 = pneg %p68
      %p75 = scmp.eq.s32.totalorder %s17, 1
      %p76 = por %p74, %p75
      %p77 = scmp.ne.s32.totalorder %s69, %s72
      %p78 = scmp.eq.s32.totalorder %s17, 0
      %p79 = por %p77, %p78
      %p80 = scmp.ne.s32.totalorder %s69, %s72
      %p81 = scmp.eq.s32.totalorder %s22, 1
      %p82 = por %p80, %p81
      %p83 = scmp.ne.s32.totalorder %s72, %s73
      %p84 = scmp.eq.s32.totalorder %s22, 0
      %p85 = por %p83, %p84
      %p86 = scmp.ne.s32.totalorder %s72, %s73
      %p87 = scmp.eq.s32.totalorder %s23, 1
      %p88 = por %p86, %p87
      %p90 = scmp.ne.s32.totalorder %s73, %s89
      %p91 = scmp.eq.s32.totalorder %s23, 0
      %p92 = por %p90, %p91
      %s93 = ssub.s32 %s24, %s36
      %p94 = scmp.eq.s32.totalorder %s93, 0
      %s96 = sadd.s32 %s95, 1
      %s97 = scalar_select %p94, %s95, %s96
      %p100 = pneg %p94
      %p101 = scmp.eq.s32.totalorder %s17, 1
      %p102 = por %p100, %p101
      %p103 = scmp.ne.s32.totalorder %s95, %s98
      %p104 = scmp.eq.s32.totalorder %s17, 0
      %p105 = por %p103, %p104
      %p106 = scmp.ne.s32.totalorder %s95, %s98
      %p107 = scmp.eq.s32.totalorder %s22, 1
      %p108 = por %p106, %p107
      %p109 = scmp.ne.s32.totalorder %s98, %s99
      %p110 = scmp.eq.s32.totalorder %s22, 0
      %p111 = por %p109, %p110
      %p112 = scmp.ne.s32.totalorder %s98, %s99
      %p113 = scmp.eq.s32.totalorder %s23, 1
      %p114 = por %p112, %p113
      %p116 = scmp.ne.s32.totalorder %s99, %s115
      %p117 = scmp.eq.s32.totalorder %s23, 0
      %p118 = por %p116, %p117
      %p119 = scmp.le.s32.totalorder 1, %s17
      %p120 = scmp.lt.s32.totalorder %s17, 3
      %p121 = pnand %p119, %p120
      %p122 = pneg %p121
      // Predicated region
      $region9: #{tpu_custom_call.1} parent=5 // pred_check
        _
      $region10: #{tpu_custom_call.1} parent=5 // pred_check_branch
        %124 = sbr.rel (%p121) target = $region12
      $region11: #{tpu_custom_call.1} parent=5 // pred_region
        %s125 = ssub.s32 %s17, 1
      $region12: #{tpu_custom_call.1} parent=5 // pred_fallthru
        _
      %p126 = scmp.lt.s32.totalorder %s17, 2
      // Predicated region
      $region13: #{tpu_custom_call.1} parent=5 // pred_check
        %p127 = pneg %p126
      $region14: #{tpu_custom_call.1} parent=5 // pred_check_branch
        %129 = sbr.rel (%p127) target = $region16
      $region15: #{tpu_custom_call.1} parent=5 // pred_region
        // Predicated region
        $region17: #{tpu_custom_call.1} parent=15 // pred_check
          %p130 = pneg %p51
        $region18: #{tpu_custom_call.1} parent=15 // pred_check_branch
          %132 = sbr.rel (%p130) target = $region20
        $region19: #{tpu_custom_call.1} parent=15 // pred_region
          %s133 = sand.u32 %s41, 1
          %s134 = scalar_lea.sflag [#allocation4], %s133
          %s135 = sand.u32 %s41, 1
          %s136 = smul.addr %s135, 8
          %s137 = scalar_lea.vmem [#allocation3], %s136
          %s138 = sadd.s32 %s24, %s25
          %140 = vsyncadd %s134, 0
          %s141 = smul.addr %s138, 8
          %s142 = scalar_lea.hbm %s0, %s141
          %s144 = sshll.u32 %s142, 4
          %s145 = int_to_ptr.hbm [resolvable:$true] %s144
          %s146 = sshll.u32 %s137, 4
          %s147 = int_to_ptr.vmem [resolvable:$true] %s146
          %149 = dma.hbm_to_vmem [thread:$0]  %s145, 128, %s147, %s134
        $region20: #{tpu_custom_call.1} parent=15 // pred_fallthru
          _
        // Predicated region
        $region21: #{tpu_custom_call.1} parent=15 // pred_check
          %p150 = pneg %p79
        $region22: #{tpu_custom_call.1} parent=15 // pred_check_branch
          %152 = sbr.rel (%p150) target = $region24
        $region23: #{tpu_custom_call.1} parent=15 // pred_region
          %s153 = sand.u32 %s69, 1
          %s154 = scalar_lea.sflag [#allocation7], %s153
          %s155 = sand.u32 %s69, 1
          %s156 = smul.addr %s155, 8
          %s157 = scalar_lea.vmem [#allocation6], %s156
          %s158 = sadd.s32 %s24, %s25
          %160 = vsyncadd %s154, 0
          %s161 = smul.addr %s158, 8
          %s162 = scalar_lea.hbm %s1, %s161
          %s164 = sshll.u32 %s162, 4
          %s165 = int_to_ptr.hbm [resolvable:$true] %s164
          %s166 = sshll.u32 %s157, 4
          %s167 = int_to_ptr.vmem [resolvable:$true] %s166
          %169 = dma.hbm_to_vmem [thread:$0]  %s165, 128, %s167, %s154
        $region24: #{tpu_custom_call.1} parent=15 // pred_fallthru
          _
      $region16: #{tpu_custom_call.1} parent=5 // pred_fallthru
        _
      %p170 = scmp.le.s32.totalorder 1, %s17
      %p171 = scmp.lt.s32.totalorder %s17, 3
      %p172 = pnand %p170, %p171
      %p173 = pneg %p172
      // Predicated region
      $region25: #{tpu_custom_call.1} parent=5 // pred_check
        _
      $region26: #{tpu_custom_call.1} parent=5 // pred_check_branch
        %175 = sbr.rel (%p172) target = $region28
      $region27: #{tpu_custom_call.1} parent=5 // pred_region
        %s176 = ssub.s32 %s17, 1
        %s177 = sand.u32 %s44, 1
        %s178 = scalar_lea.sflag [#allocation4], %s177
        %s179 = sand.u32 %s44, 1
        %s180 = smul.addr %s179, 8
        %s181 = scalar_lea.vmem [#allocation3], %s180
        // Predicated region
        $region29: #{tpu_custom_call.1} parent=27 // pred_check
          %p182 = pneg %p57
        $region30: #{tpu_custom_call.1} parent=27 // pred_check_branch
          %184 = sbr.rel (%p182) target = $region32
        $region31: #{tpu_custom_call.1} parent=27 // pred_region
          %186 = dma.done %s178, 128
        $region32: #{tpu_custom_call.1} parent=27 // pred_fallthru
          _
        %s187 = sand.u32 %s72, 1
        %s188 = scalar_lea.sflag [#allocation7], %s187
        %s189 = sand.u32 %s72, 1
        %s190 = smul.addr %s189, 8
        %s191 = scalar_lea.vmem [#allocation6], %s190
        // Predicated region
        $region33: #{tpu_custom_call.1} parent=27 // pred_check
          %p192 = pneg %p85
        $region34: #{tpu_custom_call.1} parent=27 // pred_check_branch
          %194 = sbr.rel (%p192) target = $region36
        $region35: #{tpu_custom_call.1} parent=27 // pred_region
          %196 = dma.done %s188, 128
        $region36: #{tpu_custom_call.1} parent=27 // pred_fallthru
          _
        %s197 = sand.u32 %s44, 1
        %s198 = scalar_lea.sflag [#allocation4], %s197
        %s199 = sand.u32 %s44, 1
        %s200 = smul.addr %s199, 8
        %s201 = scalar_lea.vmem [#allocation3], %s200
        %p202 = pneg %p57
        %p203 = pneg %p54
        %s204 = sand.u32 %s72, 1
        %s205 = scalar_lea.sflag [#allocation7], %s204
        %s206 = sand.u32 %s72, 1
        %s207 = smul.addr %s206, 8
        %s208 = scalar_lea.vmem [#allocation6], %s207
        %p209 = pneg %p85
        %p210 = pneg %p82
        %p211 = pneg %p111
        %p212 = pneg %p108
        %s213 = sand.u32 %s98, 1
        %s214 = scalar_lea.sflag [#allocation5], %s213
        %s215 = sand.u32 %s98, 1
        %s216 = smul.addr %s215, 24
        %s217 = scalar_lea.vmem [#allocation8], %s216
        %s218 = sadd.s32 %s26, %s27
        %s219 = sadd.s32 %s26, %s27
        %p220 = scmp.eq.s32.totalorder %s27, 0
        // Predicated region
        $region37: #{tpu_custom_call.1} parent=27 // pred_check
          %p221 = pneg %p220
        $region38: #{tpu_custom_call.1} parent=27 // pred_check_branch
          %223 = sbr.rel (%p221) target = $region40
        $region39: #{tpu_custom_call.1} parent=27 // pred_region
          %224 = vst [vmem:[#allocation2] sm:$0xff] 0.0
          %225 = vst [vmem:[#allocation2 + $0x8] sm:$0xff] 0.0
          %226 = vst [vmem:[#allocation2 + $0x10] sm:$0xff] 0.0
        $region40: #{tpu_custom_call.1} parent=27 // pred_fallthru
          _
        %v227 = vld [vmem:[%s181] sm:$0xff]
        %v228 = vld [vmem:[%s191] sm:$0xff]
        %vm229 = vcmp.gt.f32.partialorder %v228, 0.0
        %vm230 = vcmp.gt.f32.partialorder %v227, 0.5
        %vm231 = vmand %vm229, %vm230
        %v232 = vsel %vm231, 1, 0
        %v233 = vcvt.s32.f32 %v232
        %v234 = vsel %vm231, %v228, 0.0
        %v235 = vld [vmem:[#allocation2] sm:$0xff]
        %v236 = vadd.f32 %v234, 0.0
        %v237 = vadd.f32 %v235, %v236
        %238 = vst [vmem:[#allocation2] sm:$0xff] %v237
        %s239 = scalar_lea.vmem [#allocation2], 8
        %v240 = vld [vmem:[%s239] sm:$0xff]
        %v241 = vadd.f32 %v228, 0.0
        %v242 = vadd.f32 %v240, %v241
        %243 = vst [vmem:[%s239] sm:$0xff] %v242
        %s244 = scalar_lea.vmem [#allocation2], 16
        %v245 = vld [vmem:[%s244] sm:$0xff]
        %v246 = vadd.f32 %v233, 0.0
        %v247 = vadd.f32 %v245, %v246
        %248 = vst [vmem:[%s244] sm:$0xff] %v247
        // Predicated region
        $region41: #{tpu_custom_call.1} parent=27 // pred_check
          %p249 = pneg %p220
        $region42: #{tpu_custom_call.1} parent=27 // pred_check_branch
          %251 = sbr.rel (%p249) target = $region44
        $region43: #{tpu_custom_call.1} parent=27 // pred_region
          %v252 = vld [vmem:[#allocation2] sm:$0xff]
          %v253 = vld [vmem:[#allocation2 + $0x8] sm:$0xff]
          %v254 = vld [vmem:[#allocation2 + $0x10] sm:$0xff]
          %255 = vst [vmem:[%s217] sm:$0xff] %v252
          %256 = vst [vmem:[%s217 + $0x8] sm:$0xff] %v253
          %257 = vst [vmem:[%s217 + $0x10] sm:$0xff] %v254
        $region44: #{tpu_custom_call.1} parent=27 // pred_fallthru
          _
        %s258 = sand.u32 %s98, 1
        %s259 = scalar_lea.sflag [#allocation5], %s258
        %s260 = sand.u32 %s98, 1
        %s261 = smul.addr %s260, 24
        %s262 = scalar_lea.vmem [#allocation8], %s261
        // Predicated region
        $region45: #{tpu_custom_call.1} parent=27 // pred_check
          %p263 = pneg %p108
        $region46: #{tpu_custom_call.1} parent=27 // pred_check_branch
          %265 = sbr.rel (%p263) target = $region48
        $region47: #{tpu_custom_call.1} parent=27 // pred_region
          %267 = vsyncadd %s259, 0
          %s268 = smul.addr %s26, 3
          %s269 = smul.addr %s268, 8
          %s270 = scalar_lea.hbm %s2, %s269
          %s271 = sshll.u32 %s262, 4
          %s272 = int_to_ptr.vmem [resolvable:$true] %s271
          %s273 = sshll.u32 %s270, 4
          %s274 = int_to_ptr.hbm [resolvable:$true] %s273
          %279 = dma.vmem_to_hbm [thread:$0]  %s272, 384, %s274, %s259, 128, 128, 8
        $region48: #{tpu_custom_call.1} parent=27 // pred_fallthru
          _
      $region28: #{tpu_custom_call.1} parent=5 // pred_fallthru
        _
      %p280 = scmp.le.s32.totalorder 2, %s17
      // Predicated region
      $region49: #{tpu_custom_call.1} parent=5 // pred_check
        %p281 = pneg %p280
      $region50: #{tpu_custom_call.1} parent=5 // pred_check_branch
        %283 = sbr.rel (%p281) target = $region52
      $region51: #{tpu_custom_call.1} parent=5 // pred_region
        %s284 = ssub.s32 %s17, 2
        // Predicated region
        $region53: #{tpu_custom_call.1} parent=51 // pred_check
          %p285 = pneg %p114
        $region54: #{tpu_custom_call.1} parent=51 // pred_check_branch
          %287 = sbr.rel (%p285) target = $region56
        $region55: #{tpu_custom_call.1} parent=51 // pred_region
          %s288 = sand.u32 %s99, 1
          %s289 = scalar_lea.sflag [#allocation5], %s288
          %s290 = sand.u32 %s99, 1
          %s291 = smul.addr %s290, 24
          %s292 = scalar_lea.vmem [#allocation8], %s291
          %294 = dma.done %s289, 384
        $region56: #{tpu_custom_call.1} parent=51 // pred_fallthru
          _
      $region52: #{tpu_custom_call.1} parent=5 // pred_fallthru
        _
    $region6: #{tpu_custom_call.1} parent=1 // loop_footer
      %s21 = sadd.s32 1, %s17
    $region7: #{tpu_custom_call.1} parent=1 // loop_footer_branch
      %16 = sbr.rel target = $region3
    $region8: #{tpu_custom_call.1} parent=1 // loop_exit
      _
    %295 = vsyncpa [#allocation4], 1
    %s296 = scalar_lea.sflag [#allocation4], 1
    %297 = vsyncpa %s296, 1
    %298 = vsyncpa [#allocation7], 1
    %s299 = scalar_lea.sflag [#allocation7], 1
    %300 = vsyncpa %s299, 1
    %301 = vsyncpa [#allocation5], 1
    %s302 = scalar_lea.sflag [#allocation5], 1
    %303 = vsyncpa %s302, 1

</llo_original>
